<compile_context>
chip_gen: v6e
topology: v6e:2x2x1
jax: 0.10.0
libtpu: 0.0.40
codegen_flags: <defaults>
</compile_context>

<pallas_src>
import functools

import jax
import jax.numpy as jnp
from jax.experimental import pallas as pl
from jax.experimental.pallas import tpu as pltpu

LANE = 128
SUBLANE = 8


def _round_up(n, m):
    return ((n + m - 1) // m) * m


def mlp_kernel(x_ref, w1_ref, b1_ref, w2_ref, b2_ref, w3_ref, b3_ref, out_ref):
    # fc1 + relu1: MXU with f32 accumulate, f32 epilogue on the VPU.
    h1 = jnp.dot(x_ref[...], w1_ref[...], preferred_element_type=jnp.float32)
    h1 = jnp.maximum(h1 + b1_ref[...], 0.0)
    # fc2 + relu2 (cast activation to the weight dtype so bf16 path feeds bf16 MXU).
    h2 = jnp.dot(h1.astype(w2_ref.dtype), w2_ref[...], preferred_element_type=jnp.float32)
    h2 = jnp.maximum(h2 + b2_ref[...], 0.0)
    # fc3 (output padded to 128 lanes -> unmasked full-vreg stores).
    h3 = jnp.dot(h2.astype(w3_ref.dtype), w3_ref[...], preferred_element_type=jnp.float32)
    out_ref[...] = (h3 + b3_ref[...]).astype(out_ref.dtype)


def prepare_params(params, num_classes, compute_dtype=jnp.float32):
    """One-time weight prep (NOT in the per-call hot path):
    transpose to (in, out), pad fc3 out-dim to a multiple of 128 lanes with zeros,
    reshape biases to (1, N), cast matmul operands to compute_dtype (biases stay f32)."""
    nc_pad = _round_up(max(num_classes, 1), LANE)
    w1 = jnp.asarray(params["w1"]).T.astype(compute_dtype)          # (in, 64)
    w2 = jnp.asarray(params["w2"]).T.astype(compute_dtype)          # (64, 32)
    w3_t = jnp.asarray(params["w3"]).T.astype(compute_dtype)        # (32, C)
    w3 = jnp.zeros((w3_t.shape[0], nc_pad), compute_dtype).at[:, :num_classes].set(w3_t)
    b1 = jnp.asarray(params["b1"]).reshape(1, -1).astype(jnp.float32)
    b2 = jnp.asarray(params["b2"]).reshape(1, -1).astype(jnp.float32)
    b3 = jnp.zeros((1, nc_pad), jnp.float32).at[:, :num_classes].set(
        jnp.asarray(params["b3"]).astype(jnp.float32))
    return {"w1": w1, "b1": b1, "w2": w2, "b2": b2, "w3": w3, "b3": b3}


@functools.partial(jax.jit, static_argnames=("num_classes", "block_rows"))
def crop_classifier_forward(x, prepped, num_classes, *, block_rows=512):
    """x: (B, input_size). prepped: output of prepare_params. Returns (B, num_classes) f32."""
    w1, b1 = prepped["w1"], prepped["b1"]
    w2, b2 = prepped["w2"], prepped["b2"]
    w3, b3 = prepped["w3"], prepped["b3"]
    compute_dtype = w1.dtype
    B, K = x.shape
    nc_pad = w3.shape[1]

    # Batch tile: multiple of 8 sublanes, no bigger than the (padded) batch itself.
    tb = _round_up(min(block_rows, _round_up(B, SUBLANE)), SUBLANE)
    b_pad = _round_up(B, tb)
    if b_pad != B:
        x = jnp.pad(x, ((0, b_pad - B), (0, 0)))
    x = x.astype(compute_dtype)

    grid = (pl.cdiv(b_pad, tb),)
    const = lambda a: pl.BlockSpec(a.shape, lambda i: (0,) * a.ndim)  # VMEM-resident weights

    out = pl.pallas_call(
        mlp_kernel,
        out_shape=jax.ShapeDtypeStruct((b_pad, nc_pad), jnp.float32),
        grid=grid,
        in_specs=[
            pl.BlockSpec((tb, K), lambda i: (i, 0)),   # x: streamed per batch tile
            const(w1), const(b1),
            const(w2), const(b2),
            const(w3), const(b3),
        ],
        out_specs=pl.BlockSpec((tb, nc_pad), lambda i: (i, 0)),
        compiler_params=pltpu.CompilerParams(dimension_semantics=("parallel",)),
    )(x, w1, b1, w2, b2, w3, b3)

    return out[:B, :num_classes]


def init_params(key, input_size, num_classes):
    """Deterministic init mimicking nn.Linear's uniform(-1/sqrt(fan_in), 1/sqrt(fan_in))."""
    ks = jax.random.split(key, 6)

    def linear(kw, kb, fan_in, fan_out):
        bound = 1.0 / jnp.sqrt(fan_in)
        w = jax.random.uniform(kw, (fan_out, fan_in), jnp.float32, -bound, bound)
        b = jax.random.uniform(kb, (fan_out,), jnp.float32, -bound, bound)
        return w, b

    w1, b1 = linear(ks[0], ks[1], input_size, 64)
    w2, b2 = linear(ks[2], ks[3], 64, 32)
    w3, b3 = linear(ks[4], ks[5], 32, num_classes)
    return {"w1": w1, "b1": b1, "w2": w2, "b2": b2, "w3": w3, "b3": b3}


def reference_forward(x, p):
    h = jnp.maximum(x @ p["w1"].T + p["b1"], 0.0)
    h = jnp.maximum(h @ p["w2"].T + p["b2"], 0.0)
    return h @ p["w3"].T + p["b3"]


if __name__ == "__main__":
    input_size = 8   # e.g. soil/weather features
    num_classes = 4

    key = jax.random.PRNGKey(0)
    k_x, k_p, k_x2 = jax.random.split(key, 3)
    params = init_params(k_p, input_size, num_classes)

    # --- Test 1: tiny batch (B=2), f32 path, exact match to reference. ---
    x_small = jax.random.normal(k_x, (2, input_size), jnp.float32)
    prepped_f32 = prepare_params(params, num_classes, jnp.float32)
    out_small = jax.block_until_ready(
        crop_classifier_forward(x_small, prepped_f32, num_classes))
    ref_small = reference_forward(x_small, params)
    assert out_small.shape == (2, num_classes)
    assert jnp.allclose(out_small, ref_small, atol=1e-5, rtol=1e-5)

    # --- Test 2: non-multiple-of-8 batch exercises row padding + batch grid, f32. ---
    x_mid = jax.random.normal(k_x2, (100, input_size), jnp.float32)
    out_mid = jax.block_until_ready(
        crop_classifier_forward(x_mid, prepped_f32, num_classes, block_rows=64))
    ref_mid = reference_forward(x_mid, params)
    assert out_mid.shape == (100, num_classes)
    assert jnp.allclose(out_mid, ref_mid, atol=1e-5, rtol=1e-5)

    # --- Test 3: bf16 matmul operands with f32 accumulate/epilogue (v6e/v7x HBM win). ---
    prepped_bf16 = prepare_params(params, num_classes, jnp.bfloat16)
    out_bf16 = jax.block_until_ready(
        crop_classifier_forward(x_mid, prepped_bf16, num_classes, block_rows=64))
    assert out_bf16.shape == (100, num_classes)
    assert jnp.allclose(out_bf16, ref_mid, atol=1e-1, rtol=1e-1)

    print("KERNEL_OK")
</pallas_src>

<mosaic_0001>
module attributes {stable_mosaic.version = 11 : i64} {
  func.func @mlp_kernel(%arg0: i32, %arg1: memref<8x8xf32, #tpu.memory_space<vmem>>, %arg2: memref<8x64xf32, #tpu.memory_space<vmem>>, %arg3: memref<1x64xf32, #tpu.memory_space<vmem>>, %arg4: memref<64x32xf32, #tpu.memory_space<vmem>>, %arg5: memref<1x32xf32, #tpu.memory_space<vmem>>, %arg6: memref<32x128xf32, #tpu.memory_space<vmem>>, %arg7: memref<1x128xf32, #tpu.memory_space<vmem>>, %arg8: memref<8x128xf32, #tpu.memory_space<vmem>>) attributes {dimension_semantics = [#tpu.dimension_semantics<parallel>], iteration_bounds = array<i64: 1>, scalar_prefetch = 0 : i64, scratch_operands = 0 : i64, tpu.core_type = #tpu.core_type<tc>, window_params = [{transform_indices = @transform_0, window_bounds = array<i64: 8, 8>}, {pipeline_mode = #tpu.pipeline_mode<synchronous>, transform_indices = @transform_1, window_bounds = array<i64: 8, 64>}, {pipeline_mode = #tpu.pipeline_mode<synchronous>, transform_indices = @transform_2, window_bounds = array<i64: 1, 64>}, {pipeline_mode = #tpu.pipeline_mode<synchronous>, transform_indices = @transform_3, window_bounds = array<i64: 64, 32>}, {pipeline_mode = #tpu.pipeline_mode<synchronous>, transform_indices = @transform_4, window_bounds = array<i64: 1, 32>}, {pipeline_mode = #tpu.pipeline_mode<synchronous>, transform_indices = @transform_5, window_bounds = array<i64: 32, 128>}, {pipeline_mode = #tpu.pipeline_mode<synchronous>, transform_indices = @transform_6, window_bounds = array<i64: 1, 128>}, {transform_indices = @transform_7, window_bounds = array<i64: 8, 128>}]} {
    %c0 = arith.constant 0 : index
    %c0_0 = arith.constant 0 : index
    %0 = vector.load %arg1[%c0, %c0_0] : memref<8x8xf32, #tpu.memory_space<vmem>>, vector<8x8xf32>
    %c0_1 = arith.constant 0 : index
    %c0_2 = arith.constant 0 : index
    %1 = vector.load %arg2[%c0_1, %c0_2] : memref<8x64xf32, #tpu.memory_space<vmem>>, vector<8x64xf32>
    %cst = arith.constant dense<0.000000e+00> : vector<8x64xf32>
    %2 = tpu.matmul %0, %1, %cst {dimension_numbers = #tpu.dot_dimension_numbers<[1], [0], [0], [1], [0, 0, 1, 1], [], []>} : vector<8x8xf32>, vector<8x64xf32>, vector<8x64xf32> -> vector<8x64xf32>
    %c0_3 = arith.constant 0 : index
    %c0_4 = arith.constant 0 : index
    %3 = vector.load %arg3[%c0_3, %c0_4] : memref<1x64xf32, #tpu.memory_space<vmem>>, vector<1x64xf32>
    %4 = vector.broadcast %3 : vector<1x64xf32> to vector<8x64xf32>
    %5 = arith.addf %2, %4 : vector<8x64xf32>
    %cst_5 = arith.constant 0.000000e+00 : f32
    %6 = vector.broadcast %cst_5 : f32 to vector<8x64xf32>
    %7 = arith.maximumf %5, %6 : vector<8x64xf32>
    %c0_6 = arith.constant 0 : index
    %c0_7 = arith.constant 0 : index
    %8 = vector.load %arg4[%c0_6, %c0_7] : memref<64x32xf32, #tpu.memory_space<vmem>>, vector<64x32xf32>
    %cst_8 = arith.constant dense<0.000000e+00> : vector<8x32xf32>
    %9 = tpu.matmul %7, %8, %cst_8 {dimension_numbers = #tpu.dot_dimension_numbers<[1], [0], [0], [1], [0, 0, 1, 1], [], []>} : vector<8x64xf32>, vector<64x32xf32>, vector<8x32xf32> -> vector<8x32xf32>
    %c0_9 = arith.constant 0 : index
    %c0_10 = arith.constant 0 : index
    %10 = vector.load %arg5[%c0_9, %c0_10] : memref<1x32xf32, #tpu.memory_space<vmem>>, vector<1x32xf32>
    %11 = vector.broadcast %10 : vector<1x32xf32> to vector<8x32xf32>
    %12 = arith.addf %9, %11 : vector<8x32xf32>
    %cst_11 = arith.constant 0.000000e+00 : f32
    %13 = vector.broadcast %cst_11 : f32 to vector<8x32xf32>
    %14 = arith.maximumf %12, %13 : vector<8x32xf32>
    %c0_12 = arith.constant 0 : index
    %c0_13 = arith.constant 0 : index
    %15 = vector.load %arg6[%c0_12, %c0_13] : memref<32x128xf32, #tpu.memory_space<vmem>>, vector<32x128xf32>
    %cst_14 = arith.constant dense<0.000000e+00> : vector<8x128xf32>
    %16 = tpu.matmul %14, %15, %cst_14 {dimension_numbers = #tpu.dot_dimension_numbers<[1], [0], [0], [1], [0, 0, 1, 1], [], []>} : vector<8x32xf32>, vector<32x128xf32>, vector<8x128xf32> -> vector<8x128xf32>
    %c0_15 = arith.constant 0 : index
    %c0_16 = arith.constant 0 : index
    %17 = vector.load %arg7[%c0_15, %c0_16] : memref<1x128xf32, #tpu.memory_space<vmem>>, vector<1x128xf32>
    %18 = vector.broadcast %17 : vector<1x128xf32> to vector<8x128xf32>
    %19 = arith.addf %16, %18 : vector<8x128xf32>
    %c0_17 = arith.constant 0 : index
    %c0_18 = arith.constant 0 : index
    %20 = vector.load %arg8[%c0_17, %c0_18] : memref<8x128xf32, #tpu.memory_space<vmem>>, vector<8x128xf32>
    tpu.vector_store %arg8[%c0_17, %c0_18], %19 {strides = array<i32>} : memref<8x128xf32, #tpu.memory_space<vmem>>, vector<8x128xf32>,
    return
  }
  func.func @transform_0(%arg0: i32) -> (i32, i32) {
    %c0_i32 = arith.constant 0 : i32
    %c0_i32_0 = arith.constant 0 : i32
    return %arg0, %c0_i32 : i32, i32
  }
  func.func @transform_1(%arg0: i32) -> (i32, i32) {
    %c0_i32 = arith.constant 0 : i32
    %c0_i32_0 = arith.constant 0 : i32
    %c0_i32_1 = arith.constant 0 : i32
    return %c0_i32, %c0_i32_0 : i32, i32
  }
  func.func @transform_2(%arg0: i32) -> (i32, i32) {
    %c0_i32 = arith.constant 0 : i32
    %c0_i32_0 = arith.constant 0 : i32
    %c0_i32_1 = arith.constant 0 : i32
    return %c0_i32, %c0_i32_0 : i32, i32
  }
  func.func @transform_3(%arg0: i32) -> (i32, i32) {
    %c0_i32 = arith.constant 0 : i32
    %c0_i32_0 = arith.constant 0 : i32
    %c0_i32_1 = arith.constant 0 : i32
    return %c0_i32, %c0_i32_0 : i32, i32
  }
  func.func @transform_4(%arg0: i32) -> (i32, i32) {
    %c0_i32 = arith.constant 0 : i32
    %c0_i32_0 = arith.constant 0 : i32
    %c0_i32_1 = arith.constant 0 : i32
    return %c0_i32, %c0_i32_0 : i32, i32
  }
  func.func @transform_5(%arg0: i32) -> (i32, i32) {
    %c0_i32 = arith.constant 0 : i32
    %c0_i32_0 = arith.constant 0 : i32
    %c0_i32_1 = arith.constant 0 : i32
    return %c0_i32, %c0_i32_0 : i32, i32
  }
  func.func @transform_6(%arg0: i32) -> (i32, i32) {
    %c0_i32 = arith.constant 0 : i32
    %c0_i32_0 = arith.constant 0 : i32
    %c0_i32_1 = arith.constant 0 : i32
    return %c0_i32, %c0_i32_0 : i32, i32
  }
  func.func @transform_7(%arg0: i32) -> (i32, i32) {
    %c0_i32 = arith.constant 0 : i32
    %c0_i32_0 = arith.constant 0 : i32
    return %arg0, %c0_i32 : i32, i32
  }
}

</mosaic_0001>

<llo_original>
// kernel: crop_classifier_forward.1
$region0: #{crop_classifier_forward.1}
  #allocation0 [shape = 'u32[]', space=smem, size = 0x4, offset = 0x4, fixed_abs, tag = 'smem constant byte address 0x4 - core index']
  #allocation1 [shape = 'u32[144,128]{1,0:T(1,128)}', space=vmem, size = 0x12000, scoped, tag = 'internal scratch']
  %s0 = inlined_call_operand.vmem [shape: f32[8,8], index: 0, kind: input, shape index: {}]
  %s1 = inlined_call_operand.vmem [shape: f32[8,64], index: 1, kind: input, shape index: {}]
  %s2 = inlined_call_operand.vmem [shape: f32[1,64], index: 2, kind: input, shape index: {}]
  %s3 = inlined_call_operand.vmem [shape: f32[64,32], index: 3, kind: input, shape index: {}]
  %s4 = inlined_call_operand.vmem [shape: f32[1,32], index: 4, kind: input, shape index: {}]
  %s5 = inlined_call_operand.vmem [shape: f32[32,128], index: 5, kind: input, shape index: {}]
  %s6 = inlined_call_operand.vmem [shape: f32[1,128], index: 6, kind: input, shape index: {}]
  %s7 = inlined_call_operand.vmem [shape: f32[8,128], index: 7, kind: output, shape index: {}]
  %s8 = sld [smem:[#allocation0]]
  $region38: #{crop_classifier_forward.1} parent=0
    _
  %s10 = ssub.s32 1, %s8
  %s11 = scalar_select 0, %s10, %s8
  // Predicated region
  $region2: #{crop_classifier_forward.1} parent=0 // pred_check
    _
  $region3: #{crop_classifier_forward.1} parent=0 // pred_check_branch
    %13 = sbr.rel (0) target = $region5
  $region4: #{crop_classifier_forward.1} parent=0 // pred_region
    _
  $region5: #{crop_classifier_forward.1} parent=0 // pred_fallthru
    _
  // Predicated region
  $region6: #{crop_classifier_forward.1} parent=0 // pred_check
    _
  $region7: #{crop_classifier_forward.1} parent=0 // pred_check_branch
    %15 = sbr.rel (0) target = $region9
  $region8: #{crop_classifier_forward.1} parent=0 // pred_region
    _
  $region9: #{crop_classifier_forward.1} parent=0 // pred_fallthru
    _
  // Predicated region
  $region10: #{crop_classifier_forward.1} parent=0 // pred_check
    _
  $region11: #{crop_classifier_forward.1} parent=0 // pred_check_branch
    %17 = sbr.rel (0) target = $region13
  $region12: #{crop_classifier_forward.1} parent=0 // pred_region
    _
  $region13: #{crop_classifier_forward.1} parent=0 // pred_fallthru
    _
  // Predicated region
  $region14: #{crop_classifier_forward.1} parent=0 // pred_check
    _
  $region15: #{crop_classifier_forward.1} parent=0 // pred_check_branch
    %19 = sbr.rel (0) target = $region17
  $region16: #{crop_classifier_forward.1} parent=0 // pred_region
    _
  $region17: #{crop_classifier_forward.1} parent=0 // pred_fallthru
    _
  // Predicated region
  $region18: #{crop_classifier_forward.1} parent=0 // pred_check
    _
  $region19: #{crop_classifier_forward.1} parent=0 // pred_check_branch
    %21 = sbr.rel (0) target = $region21
  $region20: #{crop_classifier_forward.1} parent=0 // pred_region
    _
  $region21: #{crop_classifier_forward.1} parent=0 // pred_fallthru
    _
  // Predicated region
  $region22: #{crop_classifier_forward.1} parent=0 // pred_check
    _
  $region23: #{crop_classifier_forward.1} parent=0 // pred_check_branch
    %23 = sbr.rel (0) target = $region25
  $region24: #{crop_classifier_forward.1} parent=0 // pred_region
    _
  $region25: #{crop_classifier_forward.1} parent=0 // pred_fallthru
    _
  // Predicated region
  $region26: #{crop_classifier_forward.1} parent=0 // pred_check
    _
  $region27: #{crop_classifier_forward.1} parent=0 // pred_check_branch
    %25 = sbr.rel (0) target = $region29
  $region28: #{crop_classifier_forward.1} parent=0 // pred_region
    _
  $region29: #{crop_classifier_forward.1} parent=0 // pred_fallthru
    _
  %v26 = vld [vmem:[%s0] sm:$0xff]
  %v27 = vld [vmem:[%s1] sm:$0xff]
  %v28 = vld [vmem:[%s2] sm:$0x1]
  %v30 = vlaneseq
  %v31 = vshrl.u32 %v30, 7
  %v32 = vsub.s32 0, %v31
  %v33 = vrot.slane %v28, %v32
  %vm35 = vcmask 64512
  %v37 = vsel %vm35, %v26, 0
  %39 = vmatprep.subr.mxu0 0.0
  %40 = vmatpush1.msra.mxu0 0.0
  %41 = vmatprep.subr.mxu0 0.0
  %42 = vmatpush1.msra.mxu0 0.0
  %43 = vmatprep.subr.mxu0 0.0
  %44 = vmatpush1.msra.mxu0 0.0
  %45 = vmatprep.subr.mxu0 0.0
  %46 = vmatpush1.msra.mxu0 0.0
  %47 = vmatprep.subr.mxu0 0.0
  %48 = vmatpush1.msra.mxu0 0.0
  %49 = vmatprep.subr.mxu0 0.0
  %50 = vmatpush1.msra.mxu0 0.0
  %51 = vmatprep.subr.mxu0 0.0
  %52 = vmatpush1.msra.mxu0 0.0
  %53 = vmatprep.subr.mxu0 0.0
  %54 = vmatpush1.msra.mxu0 0.0
  %55 = vmatprep.subr.mxu0 0.0
  %56 = vmatpush1.msra.mxu0 0.0
  %57 = vmatprep.subr.mxu0 0.0
  %58 = vmatpush1.msra.mxu0 0.0
  %59 = vmatprep.subr.mxu0 0.0
  %60 = vmatpush1.msra.mxu0 0.0
  %61 = vmatprep.subr.mxu0 0.0
  %62 = vmatpush1.msra.mxu0 0.0
  %63 = vmatprep.subr.mxu0 0.0
  %64 = vmatpush1.msra.mxu0 0.0
  %65 = vmatprep.subr.mxu0 0.0
  %66 = vmatpush1.msra.mxu0 0.0
  %67 = vmatprep.subr.mxu0 0.0
  %68 = vmatpush1.msra.mxu0 0.0
  %69 = vmatprep.subr.mxu0 0.0
  %70 = vmatpush1.msra.mxu0 %v27
  %71 = vmatprep.subr.mxu0 0.0
  %72 = vmatpush2.msra.mxu0 0.0
  %73 = vmatprep.subr.mxu0 0.0
  %74 = vmatpush2.msra.mxu0 0.0
  %75 = vmatprep.subr.mxu0 0.0
  %76 = vmatpush2.msra.mxu0 0.0
  %77 = vmatprep.subr.mxu0 0.0
  %78 = vmatpush2.msra.mxu0 0.0
  %79 = vmatprep.subr.mxu0 0.0
  %80 = vmatpush2.msra.mxu0 0.0
  %81 = vmatprep.subr.mxu0 0.0
  %82 = vmatpush2.msra.mxu0 0.0
  %83 = vmatprep.subr.mxu0 0.0
  %84 = vmatpush2.msra.mxu0 0.0
  %85 = vmatprep.subr.mxu0 0.0
  %86 = vmatpush2.msra.mxu0 0.0
  %87 = vmatprep.subr.mxu0 0.0
  %88 = vmatpush2.msra.mxu0 0.0
  %89 = vmatprep.subr.mxu0 0.0
  %90 = vmatpush2.msra.mxu0 0.0
  %91 = vmatprep.subr.mxu0 0.0
  %92 = vmatpush2.msra.mxu0 0.0
  %93 = vmatprep.subr.mxu0 0.0
  %94 = vmatpush2.msra.mxu0 0.0
  %95 = vmatprep.subr.mxu0 0.0
  %96 = vmatpush2.msra.mxu0 0.0
  %97 = vmatprep.subr.mxu0 0.0
  %98 = vmatpush2.msra.mxu0 0.0
  %99 = vmatprep.subr.mxu0 0.0
  %100 = vmatpush2.msra.mxu0 0.0
  %101 = vmatprep.subr.mxu0 0.0
  %102 = vmatpush2.msra.mxu0 0.0
  %103 = vmatprep.mubr.f32.mxu0 0.0
  %104 = vmatmul.mubr.f32.gmra.mxu0 %v37
  %v105 = vpop.f32.mrf.mxu0
  %v106 = vadd.f32 %v33, %v105
  %v107 = vpop.f32.mrf.mxu0
  %108 = vdwg.mxu0
  %v109 = vmax.f32 %v106, 0.0
  %v110 = vld [vmem:[%s3] sm:$0xff]
  %v111 = vld [vmem:[%s3 + $0x8] sm:$0xff]
  %v112 = vld [vmem:[%s3 + $0x10] sm:$0xff]
  %v113 = vld [vmem:[%s3 + $0x18] sm:$0xff]
  %v114 = vld [vmem:[%s3 + $0x20] sm:$0xff]
  %v115 = vld [vmem:[%s3 + $0x28] sm:$0xff]
  %v116 = vld [vmem:[%s3 + $0x30] sm:$0xff]
  %v117 = vld [vmem:[%s3 + $0x38] sm:$0xff]
  %v118 = vld [vmem:[%s4] sm:$0x1]
  %v120 = vlaneseq
  %v121 = vshrl.u32 %v120, 7
  %v122 = vsub.s32 0, %v121
  %v123 = vrot.slane %v118, %v122
  %vm125 = vcmask 523264
  %v127 = vsel %vm125, %v109, 0
  %129 = vmatprep.subr.mxu0 0.0
  %130 = vmatpush1.msra.mxu0 0.0
  %131 = vmatprep.subr.mxu0 0.0
  %132 = vmatpush1.msra.mxu0 0.0
  %133 = vmatprep.subr.mxu0 0.0
  %134 = vmatpush1.msra.mxu0 0.0
  %135 = vmatprep.subr.mxu0 0.0
  %136 = vmatpush1.msra.mxu0 0.0
  %137 = vmatprep.subr.mxu0 0.0
  %138 = vmatpush1.msra.mxu0 0.0
  %139 = vmatprep.subr.mxu0 0.0
  %140 = vmatpush1.msra.mxu0 0.0
  %141 = vmatprep.subr.mxu0 0.0
  %142 = vmatpush1.msra.mxu0 0.0
  %143 = vmatprep.subr.mxu0 0.0
  %144 = vmatpush1.msra.mxu0 0.0
  %145 = vmatprep.subr.mxu0 0.0
  %146 = vmatpush1.msra.mxu0 %v117
  %147 = vmatprep.subr.mxu0 0.0
  %148 = vmatpush1.msra.mxu0 %v116
  %149 = vmatprep.subr.mxu0 0.0
  %150 = vmatpush1.msra.mxu0 %v115
  %151 = vmatprep.subr.mxu0 0.0
  %152 = vmatpush1.msra.mxu0 %v114
  %153 = vmatprep.subr.mxu0 0.0
  %154 = vmatpush1.msra.mxu0 %v113
  %155 = vmatprep.subr.mxu0 0.0
  %156 = vmatpush1.msra.mxu0 %v112
  %157 = vmatprep.subr.mxu0 0.0
  %158 = vmatpush1.msra.mxu0 %v111
  %159 = vmatprep.subr.mxu0 0.0
  %160 = vmatpush1.msra.mxu0 %v110
  %161 = vmatprep.subr.mxu0 0.0
  %162 = vmatpush2.msra.mxu0 0.0
  %163 = vmatprep.subr.mxu0 0.0
  %164 = vmatpush2.msra.mxu0 0.0
  %165 = vmatprep.subr.mxu0 0.0
  %166 = vmatpush2.msra.mxu0 0.0
  %167 = vmatprep.subr.mxu0 0.0
  %168 = vmatpush2.msra.mxu0 0.0
  %169 = vmatprep.subr.mxu0 0.0
  %170 = vmatpush2.msra.mxu0 0.0
  %171 = vmatprep.subr.mxu0 0.0
  %172 = vmatpush2.msra.mxu0 0.0
  %173 = vmatprep.subr.mxu0 0.0
  %174 = vmatpush2.msra.mxu0 0.0
  %175 = vmatprep.subr.mxu0 0.0
  %176 = vmatpush2.msra.mxu0 0.0
  %177 = vmatprep.subr.mxu0 0.0
  %178 = vmatpush2.msra.mxu0 0.0
  %179 = vmatprep.subr.mxu0 0.0
  %180 = vmatpush2.msra.mxu0 0.0
  %181 = vmatprep.subr.mxu0 0.0
  %182 = vmatpush2.msra.mxu0 0.0
  %183 = vmatprep.subr.mxu0 0.0
  %184 = vmatpush2.msra.mxu0 0.0
  %185 = vmatprep.subr.mxu0 0.0
  %186 = vmatpush2.msra.mxu0 0.0
  %187 = vmatprep.subr.mxu0 0.0
  %188 = vmatpush2.msra.mxu0 0.0
  %189 = vmatprep.subr.mxu0 0.0
  %190 = vmatpush2.msra.mxu0 0.0
  %191 = vmatprep.subr.mxu0 0.0
  %192 = vmatpush2.msra.mxu0 0.0
  %193 = vmatprep.mubr.f32.mxu0 0.0
  %194 = vmatmul.mubr.f32.gmra.mxu0 %v127
  %v195 = vpop.f32.mrf.mxu0
  %v196 = vadd.f32 %v123, %v195
  %v197 = vpop.f32.mrf.mxu0
  %198 = vdwg.mxu0
  %v199 = vmax.f32 %v196, 0.0
  %v200 = vld [vmem:[%s5] sm:$0xff]
  %v201 = vld [vmem:[%s5 + $0x8] sm:$0xff]
  %v202 = vld [vmem:[%s5 + $0x10] sm:$0xff]
  %v203 = vld [vmem:[%s5 + $0x18] sm:$0xff]
  %v204 = vld [vmem:[%s6] sm:$0x1]
  %v206 = vlaneseq
  %v207 = vshrl.u32 %v206, 7
  %v208 = vsub.s32 0, %v207
  %v209 = vrot.slane %v204, %v208
  %vm211 = vcmask 261120
  %v213 = vsel %vm211, %v199, 0
  %215 = vmatprep.subr.mxu0 0.0
  %216 = vmatpush1.msra.mxu0 0.0
  %217 = vmatprep.subr.mxu0 0.0
  %218 = vmatpush1.msra.mxu0 0.0
  %219 = vmatprep.subr.mxu0 0.0
  %220 = vmatpush1.msra.mxu0 0.0
  %221 = vmatprep.subr.mxu0 0.0
  %222 = vmatpush1.msra.mxu0 0.0
  %223 = vmatprep.subr.mxu0 0.0
  %224 = vmatpush1.msra.mxu0 0.0
  %225 = vmatprep.subr.mxu0 0.0
  %226 = vmatpush1.msra.mxu0 0.0
  %227 = vmatprep.subr.mxu0 0.0
  %228 = vmatpush1.msra.mxu0 0.0
  %229 = vmatprep.subr.mxu0 0.0
  %230 = vmatpush1.msra.mxu0 0.0
  %231 = vmatprep.subr.mxu0 0.0
  %232 = vmatpush1.msra.mxu0 0.0
  %233 = vmatprep.subr.mxu0 0.0
  %234 = vmatpush1.msra.mxu0 0.0
  %235 = vmatprep.subr.mxu0 0.0
  %236 = vmatpush1.msra.mxu0 0.0
  %237 = vmatprep.subr.mxu0 0.0
  %238 = vmatpush1.msra.mxu0 0.0
  %239 = vmatprep.subr.mxu0 0.0
  %240 = vmatpush1.msra.mxu0 %v203
  %241 = vmatprep.subr.mxu0 0.0
  %242 = vmatpush1.msra.mxu0 %v202
  %243 = vmatprep.subr.mxu0 0.0
  %244 = vmatpush1.msra.mxu0 %v201
  %245 = vmatprep.subr.mxu0 0.0
  %246 = vmatpush1.msra.mxu0 %v200
  %247 = vmatprep.subr.mxu0 0.0
  %248 = vmatpush2.msra.mxu0 0.0
  %249 = vmatprep.subr.mxu0 0.0
  %250 = vmatpush2.msra.mxu0 0.0
  %251 = vmatprep.subr.mxu0 0.0
  %252 = vmatpush2.msra.mxu0 0.0
  %253 = vmatprep.subr.mxu0 0.0
  %254 = vmatpush2.msra.mxu0 0.0
  %255 = vmatprep.subr.mxu0 0.0
  %256 = vmatpush2.msra.mxu0 0.0
  %257 = vmatprep.subr.mxu0 0.0
  %258 = vmatpush2.msra.mxu0 0.0
  %259 = vmatprep.subr.mxu0 0.0
  %260 = vmatpush2.msra.mxu0 0.0
  %261 = vmatprep.subr.mxu0 0.0
  %262 = vmatpush2.msra.mxu0 0.0
  %263 = vmatprep.subr.mxu0 0.0
  %264 = vmatpush2.msra.mxu0 0.0
  %265 = vmatprep.subr.mxu0 0.0
  %266 = vmatpush2.msra.mxu0 0.0
  %267 = vmatprep.subr.mxu0 0.0
  %268 = vmatpush2.msra.mxu0 0.0
  %269 = vmatprep.subr.mxu0 0.0
  %270 = vmatpush2.msra.mxu0 0.0
  %271 = vmatprep.subr.mxu0 0.0
  %272 = vmatpush2.msra.mxu0 0.0
  %273 = vmatprep.subr.mxu0 0.0
  %274 = vmatpush2.msra.mxu0 0.0
  %275 = vmatprep.subr.mxu0 0.0
  %276 = vmatpush2.msra.mxu0 0.0
  %277 = vmatprep.subr.mxu0 0.0
  %278 = vmatpush2.msra.mxu0 0.0
  %279 = vmatprep.mubr.f32.mxu0 0.0
  %280 = vmatmul.mubr.f32.gmra.mxu0 %v213
  %v281 = vpop.f32.mrf.mxu0
  %v282 = vadd.f32 %v209, %v281
  %v283 = vpop.f32.mrf.mxu0
  %284 = vdwg.mxu0
  %285 = vst [vmem:[%s7] sm:$0xff] %v282
  // Predicated region
  $region30: #{crop_classifier_forward.1} parent=0 // pred_check
    _
  $region31: #{crop_classifier_forward.1} parent=0 // pred_check_branch
    %287 = sbr.rel (0) target = $region33
  $region32: #{crop_classifier_forward.1} parent=0 // pred_region
    _
  $region33: #{crop_classifier_forward.1} parent=0 // pred_fallthru
    _
  // Predicated region
  $region34: #{crop_classifier_forward.1} parent=0 // pred_check
    _
  $region35: #{crop_classifier_forward.1} parent=0 // pred_check_branch
    %289 = sbr.rel (0) target = $region37
  $region36: #{crop_classifier_forward.1} parent=0 // pred_region
    _
  $region37: #{crop_classifier_forward.1} parent=0 // pred_fallthru
    _

</llo_original>
